<compile_context>
chip_gen: v5e
topology: v5e:2x2
jax: 0.10.0
libtpu: 0.0.40
codegen_flags: <defaults>
</compile_context>

<pallas_src>
import jax
import jax.numpy as jnp
from jax.experimental import pallas as pl
from jax.experimental.pallas import tpu as pltpu


def _copy_kernel(x_ref, o_ref):
    # Identity pass-through on the current (block_rows, cols) lane-dense tile.
    o_ref[...] = x_ref[...]


def _lane_dense_2d_shape(shape, total):
    """Pick a 2D view: (rows, 128) if possible, else (lead, last_dim)."""
    if total % 128 == 0:
        return (total // 128, 128)
    # TODO(synk): non-128-divisible totals fall back to the trailing-dim view
    # (still correct: full-extent last dim satisfies the tiling rule).
    last = shape[-1]
    return (total // last, last)


def _pallas_identity_copy(x2d):
    rows, cols = x2d.shape
    itemsize = x2d.dtype.itemsize
    # Sublane packing factor: 8 for f32, 16 for bf16, 32 for int8/fp8.
    packing = max(1, 4 // itemsize)
    sub = 8 * packing

    # Target ~2 MiB per tile => ~8 MiB double-buffered in+out; safe on
    # v5e (16 MiB scoped default), v6e (32 MiB) and v7x (32 MiB / 64 MiB phys).
    target_bytes = 2 * 1024 * 1024
    target_rows = max(sub, target_bytes // max(1, cols * itemsize))

    if rows <= target_rows:
        block_rows = rows  # full extent along rows: always a legal block dim
    else:
        block_rows = max(sub, (target_rows // sub) * sub)

    grid = (pl.cdiv(rows, block_rows),)

    return pl.pallas_call(
        _copy_kernel,
        out_shape=jax.ShapeDtypeStruct((rows, cols), x2d.dtype),
        grid_spec=pltpu.PrefetchScalarGridSpec(
            num_scalar_prefetch=0,
            grid=grid,
            in_specs=[pl.BlockSpec((block_rows, cols), lambda i: (i, 0))],
            out_specs=pl.BlockSpec((block_rows, cols), lambda i: (i, 0)),
        ),
        compiler_params=pltpu.CompilerParams(
            dimension_semantics=("parallel",),
            vmem_limit_bytes=32 * 1024 * 1024,
        ),
        # Identity: let XLA alias the output onto the input buffer.
        input_output_aliases={0: 0},
    )(x2d)


class InputAdapter:
    """JAX/Pallas port of the abstract InputAdapter base class."""

    def __init__(self, num_input_channels: int):
        self._num_input_channels = num_input_channels

    @property
    def num_input_channels(self) -> int:
        return self._num_input_channels

    def __call__(self, x: jnp.ndarray) -> jnp.ndarray:
        # x layout: NCHW
        assert x.ndim == 4, "expected NCHW input"
        assert x.shape[1] == self._num_input_channels, (
            f"expected {self._num_input_channels} channels, got {x.shape[1]}"
        )
        orig_shape = x.shape
        rows_cols = _lane_dense_2d_shape(orig_shape, x.size)
        x2d = x.reshape(rows_cols)
        y2d = _pallas_identity_copy(x2d)
        return y2d.reshape(orig_shape)


if __name__ == "__main__":
    key = jax.random.PRNGKey(0)
    B, C, H, W = 2, 4, 16, 16
    x = jax.random.normal(key, (B, C, H, W), dtype=jnp.float32)

    adapter = InputAdapter(num_input_channels=C)
    assert adapter.num_input_channels == C

    y = adapter(x)
    jax.block_until_ready(y)

    # Identity semantics check for the pass-through base adapter.
    assert y.shape == x.shape and y.dtype == x.dtype
    assert bool(jnp.allclose(y, x))

    print("KERNEL_OK")
</pallas_src>

<mosaic_0001>
module attributes {stable_mosaic.version = 11 : i64} {
  func.func @_copy_kernel(%arg0: i32, %arg1: memref<16x128xf32, #tpu.memory_space<vmem>>, %arg2: memref<16x128xf32, #tpu.memory_space<vmem>>) attributes {dimension_semantics = [#tpu.dimension_semantics<parallel>], iteration_bounds = array<i64: 1>, scalar_prefetch = 0 : i64, scratch_operands = 0 : i64, tpu.core_type = #tpu.core_type<tc>, window_params = [{transform_indices = @transform_0, window_bounds = array<i64: 16, 128>}, {transform_indices = @transform_1, window_bounds = array<i64: 16, 128>}]} {
    %c0 = arith.constant 0 : index
    %c0_0 = arith.constant 0 : index
    %0 = vector.load %arg1[%c0, %c0_0] : memref<16x128xf32, #tpu.memory_space<vmem>>, vector<16x128xf32>
    %c0_1 = arith.constant 0 : index
    %c0_2 = arith.constant 0 : index
    %1 = vector.load %arg2[%c0_1, %c0_2] : memref<16x128xf32, #tpu.memory_space<vmem>>, vector<16x128xf32>
    tpu.vector_store %arg2[%c0_1, %c0_2], %0 {strides = array<i32>} : memref<16x128xf32, #tpu.memory_space<vmem>>, vector<16x128xf32>,
    return
  }
  func.func @transform_0(%arg0: i32) -> (i32, i32) {
    %c0_i32 = arith.constant 0 : i32
    %c0_i32_0 = arith.constant 0 : i32
    return %arg0, %c0_i32 : i32, i32
  }
  func.func @transform_1(%arg0: i32) -> (i32, i32) {
    %c0_i32 = arith.constant 0 : i32
    %c0_i32_0 = arith.constant 0 : i32
    return %arg0, %c0_i32 : i32, i32
  }
}

</mosaic_0001>

<llo_original>
// kernel: tpu_custom_call.1
$region0: #{tpu_custom_call.1}
  #allocation0 [shape = 'u32[]', space=smem, size = 0x4, offset = 0x4, fixed_abs, tag = 'smem constant byte address 0x4 - core index']
  #allocation1 [shape = 'u32[72,128]{1,0:T(1,128)}', space=vmem, size = 0x9000, scoped, tag = 'internal scratch']
  %s0 = inlined_call_operand.hbm [shape: f32[16,128], index: 0, kind: input, shape index: {}, may-alias: {0,1}]
  %s1 = inlined_call_operand.hbm [shape: f32[16,128], index: 1, kind: output, shape index: {}, may-alias: {0,1}]
  %s2 = sld [smem:[#allocation0]]
  $region18: #{tpu_custom_call.1} parent=0
    _
  %s4 = ssub.s32 1, %s2
  %s5 = scalar_select 0, %s4, %s2
  $region1: #{tpu_custom_call.1} parent=0
    #allocation2 [shape = 'u8[8192]{0}', space=vmem, size = 0x2000, scoped, tag = 'input window, operand 0, single buffered']
    #allocation3 [shape = 's32[1]{0}', space=sflag, size = 0x4, scoped, tag = 'scoped memory for tpu_custom_call.1']
    #allocation4 [shape = 's32[1]{0}', space=sflag, size = 0x4, scoped, tag = 'scoped memory for tpu_custom_call.1']
    #allocation5 [shape = 'u8[8192]{0}', space=vmem, size = 0x2000, scoped, tag = 'output window, operand 0, single buffered']
    %6 = vsyncpa [#allocation3], 0
    %7 = vsyncpa [#allocation4], 0
    // Predicated region
    $region2: #{tpu_custom_call.1} parent=1 // pred_check
      _
    $region3: #{tpu_custom_call.1} parent=1 // pred_check_branch
      %9 = sbr.rel (0) target = $region5
    $region4: #{tpu_custom_call.1} parent=1 // pred_region
      %11 = vsyncadd [#allocation3], 0
      %s12 = sshll.u32 %s0, 4
      %s13 = int_to_ptr.hbm [resolvable:$true] %s12
      %s14 = sshll.u32 [#allocation2], 4
      %s15 = int_to_ptr.vmem [resolvable:$true] %s14
      %20 = dma.hbm_to_vmem [thread:$0]  %s13, 256, %s15, [#allocation3], 128, 128, 8
    $region5: #{tpu_custom_call.1} parent=1 // pred_fallthru
      _
    // Predicated region
    $region6: #{tpu_custom_call.1} parent=1 // pred_check
      _
    $region7: #{tpu_custom_call.1} parent=1 // pred_check_branch
      %22 = sbr.rel (0) target = $region9
    $region8: #{tpu_custom_call.1} parent=1 // pred_region
      %24 = dma.done [#allocation3], 256
    $region9: #{tpu_custom_call.1} parent=1 // pred_fallthru
      _
    %v25 = vld [vmem:[#allocation2] sm:$0xff]
    %v26 = vld [vmem:[#allocation2 + $0x8] sm:$0xff]
    %27 = vst [vmem:[#allocation5] sm:$0xff] %v25
    %28 = vst [vmem:[#allocation5 + $0x8] sm:$0xff] %v26
    // Predicated region
    $region10: #{tpu_custom_call.1} parent=1 // pred_check
      _
    $region11: #{tpu_custom_call.1} parent=1 // pred_check_branch
      %30 = sbr.rel (0) target = $region13
    $region12: #{tpu_custom_call.1} parent=1 // pred_region
      %32 = vsyncadd [#allocation4], 0
      %s33 = sshll.u32 [#allocation5], 4
      %s34 = int_to_ptr.vmem [resolvable:$true] %s33
      %s35 = sshll.u32 %s1, 4
      %s36 = int_to_ptr.hbm [resolvable:$true] %s35
      %41 = dma.vmem_to_hbm [thread:$0]  %s34, 256, %s36, [#allocation4], 128, 128, 8
    $region13: #{tpu_custom_call.1} parent=1 // pred_fallthru
      _
    // Predicated region
    $region14: #{tpu_custom_call.1} parent=1 // pred_check
      _
    $region15: #{tpu_custom_call.1} parent=1 // pred_check_branch
      %43 = sbr.rel (0) target = $region17
    $region16: #{tpu_custom_call.1} parent=1 // pred_region
      %45 = dma.done [#allocation4], 256
    $region17: #{tpu_custom_call.1} parent=1 // pred_fallthru
      _
    %46 = vsyncpa [#allocation3], 1
    %47 = vsyncpa [#allocation4], 1

</llo_original>
